<compile_context>
chip_gen: v7x
topology: tpu7x:2x2x1
jax: 0.10.0
libtpu: 0.0.40
codegen_flags: <defaults>
</compile_context>

<pallas_src>
import math

import jax
import jax.numpy as jnp
from jax.experimental import pallas as pl
from jax.experimental.pallas import tpu as pltpu

# Layer sizes of the EcoliNeuralNetwork.
D_IN, D_H1, D_H2, D_OUT = 7, 3, 2, 1

# Flat-parameter layout: 35 float32 scalars prefetched into SMEM.
_W1_OFF = 0
_B1_OFF = _W1_OFF + D_IN * D_H1           # 21
_W2_OFF = _B1_OFF + D_H1                  # 24
_B2_OFF = _W2_OFF + D_H1 * D_H2           # 30
_W3_OFF = _B2_OFF + D_H2                  # 32
_B3_OFF = _W3_OFF + D_H2 * D_OUT          # 34
N_PARAMS = _B3_OFF + D_OUT                # 35

LANE = 128        # lanes per batch group (minor axis of every tile)
MAX_R = 2048      # max sublane-groups per grid step = 262144 rows (~16 MiB VMEM dbl-buffered)
SMALL_NB = 64     # batches up to 8192 rows run as a single grid step


def _sigmoid(v):
    # 1/(1+exp(-v)) == 0.5*tanh(0.5*v) + 0.5 : keeps the transcendental on the
    # otherwise-idle EUP slot instead of exp + Newton-iteration divide on the VPU.
    return 0.5 * jnp.tanh(0.5 * v) + 0.5


def _mlp_kernel(p_ref, x_ref, o_ref):
    """p_ref: (35,) f32 SMEM.  x_ref: (7, R, 128) f32.  o_ref: (R, 128) f32."""
    # Feature slabs of this block: each is a fully dense (R, 128) tile.
    xs = [x_ref[i] for i in range(D_IN)]

    # Layer 1: 7 -> 3 (scalar-broadcast FMAs on the VPU; no MXU).
    h1 = []
    for j in range(D_H1):
        s = p_ref[_W1_OFF + j] * xs[0]
        for i in range(1, D_IN):
            s = s + p_ref[_W1_OFF + i * D_H1 + j] * xs[i]
        h1.append(_sigmoid(s + p_ref[_B1_OFF + j]))

    # Layer 2: 3 -> 2.
    h2 = []
    for j in range(D_H2):
        s = p_ref[_W2_OFF + j] * h1[0]
        for i in range(1, D_H1):
            s = s + p_ref[_W2_OFF + i * D_H2 + j] * h1[i]
        h2.append(_sigmoid(s + p_ref[_B2_OFF + j]))

    # Layer 3: 2 -> 1. Dense (R, 128) store.
    s = p_ref[_W3_OFF + 0] * h2[0] + p_ref[_W3_OFF + 1] * h2[1] + p_ref[_B3_OFF]
    o_ref[...] = _sigmoid(s)


def _pack_params(params):
    w1, b1, w2, b2, w3, b3 = params
    flat = jnp.concatenate([
        w1.reshape(-1), b1.reshape(-1),
        w2.reshape(-1), b2.reshape(-1),
        w3.reshape(-1), b3.reshape(-1),
    ]).astype(jnp.float32)
    assert flat.shape == (N_PARAMS,)
    return flat


def ecoli_forward_t(xt, params):
    """xt: (7, B) float32 (feature-major, batch on the minor axis) -> (1, B) float32."""
    flat = _pack_params(params)
    B = xt.shape[1]

    nb = pl.cdiv(B, LANE)            # number of 128-lane batch groups
    bp = nb * LANE
    if bp != B:
        # Pad only to the next 128-lane multiple (tiny; fuses with any upstream
        # layout pass under jit). No full-tile-sized pad pass anymore.
        xt = jnp.pad(xt, ((0, 0), (0, bp - B)))
    x3 = xt.reshape(D_IN, nb, LANE)  # free, row-major-preserving reshape

    # Rows-per-step (in 128-lane groups). Small batches: one step. Mid-size
    # batches: split into two steps so both v7x TensorCores get work. Huge
    # batches: cap at MAX_R (~262144 rows/step) to amortize per-step overhead.
    if nb <= SMALL_NB:
        r = nb
    elif nb <= 2 * MAX_R:
        r = min(MAX_R, ((pl.cdiv(nb, 2) + 7) // 8) * 8)
    else:
        r = MAX_R
    grid = (pl.cdiv(nb, r),)         # Pallas masks the ragged last block

    out = pl.pallas_call(
        _mlp_kernel,
        out_shape=jax.ShapeDtypeStruct((nb, LANE), jnp.float32),
        grid_spec=pltpu.PrefetchScalarGridSpec(
            num_scalar_prefetch=1,   # flat (35,) params -> SMEM
            grid=grid,
            in_specs=[pl.BlockSpec((D_IN, r, LANE), lambda i, p: (0, i, 0))],
            out_specs=pl.BlockSpec((r, LANE), lambda i, p: (i, 0)),
        ),
        compiler_params=pltpu.CompilerParams(
            dimension_semantics=("parallel",)),
    )(flat, x3)

    return out.reshape(1, bp)[:, :B]


@jax.jit
def ecoli_forward(x, params):
    """x: (B, 7) float32 -> (B, 1) float32 (matches the PyTorch module)."""
    # TODO(synk): for peak throughput the producer should emit the (7, B)
    # feature-major layout directly (use ecoli_forward_t); this transpose is one
    # extra fused HBM pass over the input. bf16 input streaming would roughly
    # halve HBM read bytes if the accuracy budget allows.
    xt = jnp.transpose(x.astype(jnp.float32))
    return ecoli_forward_t(xt, params).T


def init_params(key):
    """Xavier-normal weights, zero biases (matches _initialize_weights)."""
    dims = [(D_IN, D_H1), (D_H1, D_H2), (D_H2, D_OUT)]
    params = []
    for fan_in, fan_out in dims:
        key, sub = jax.random.split(key)
        std = math.sqrt(2.0 / (fan_in + fan_out))      # xavier_normal_, gain=1
        w = std * jax.random.normal(sub, (fan_in, fan_out), dtype=jnp.float32)
        b = jnp.zeros((fan_out,), dtype=jnp.float32)
        params += [w, b]
    return tuple(params)


def _reference(x, params):
    w1, b1, w2, b2, w3, b3 = params
    h = jax.nn.sigmoid(x @ w1 + b1)
    h = jax.nn.sigmoid(h @ w2 + b2)
    return jax.nn.sigmoid(h @ w3 + b3)


if __name__ == "__main__":
    key = jax.random.PRNGKey(0)
    pkey, xkey = jax.random.split(key)
    params = init_params(pkey)

    # Small, module-consistent shape: batch=8, 7 features.
    x = jax.random.normal(xkey, (8, 7), dtype=jnp.float32)
    y = ecoli_forward(x, params)
    jax.block_until_ready(y)
    y_ref = _reference(x, params)
    assert y.shape == (8, 1), y.shape
    assert jnp.allclose(y, y_ref, atol=1e-5, rtol=1e-5), "mismatch vs JAX reference"

    # Exercise the 128-unaligned, multi-group path (still tiny).
    x2 = jax.random.normal(jax.random.PRNGKey(1), (300, 7), dtype=jnp.float32)
    y2 = ecoli_forward(x2, params)
    jax.block_until_ready(y2)
    y2_ref = _reference(x2, params)
    assert y2.shape == (300, 1), y2.shape
    assert jnp.allclose(y2, y2_ref, atol=1e-5, rtol=1e-5), "mismatch vs JAX reference (B=300)"

    print("KERNEL_OK")
</pallas_src>

<mosaic_0001>
module attributes {stable_mosaic.version = 11 : i64} {
  func.func @_mlp_kernel(%arg0: i32, %arg1: memref<35xf32, #tpu.memory_space<smem>>, %arg2: memref<7x1x128xf32, #tpu.memory_space<vmem>>, %arg3: memref<1x128xf32, #tpu.memory_space<vmem>>) attributes {dimension_semantics = [#tpu.dimension_semantics<parallel>], iteration_bounds = array<i64: 1>, scalar_prefetch = 1 : i64, scratch_operands = 0 : i64, tpu.core_type = #tpu.core_type<tc>, window_params = [{transform_indices = @transform_0, window_bounds = array<i64: 7, 1, 128>}, {transform_indices = @transform_1, window_bounds = array<i64: 1, 128>}]} {
    %c0 = arith.constant 0 : index
    %c0_0 = arith.constant 0 : index
    %c0_1 = arith.constant 0 : index
    %0 = vector.load %arg2[%c0, %c0_0, %c0_1] : memref<7x1x128xf32, #tpu.memory_space<vmem>>, vector<1x1x128xf32>
    %1 = vector.shape_cast %0 : vector<1x1x128xf32> to vector<1x128xf32>
    %c1 = arith.constant 1 : index
    %c0_2 = arith.constant 0 : index
    %c0_3 = arith.constant 0 : index
    %2 = vector.load %arg2[%c1, %c0_2, %c0_3] : memref<7x1x128xf32, #tpu.memory_space<vmem>>, vector<1x1x128xf32>
    %3 = vector.shape_cast %2 : vector<1x1x128xf32> to vector<1x128xf32>
    %c2 = arith.constant 2 : index
    %c0_4 = arith.constant 0 : index
    %c0_5 = arith.constant 0 : index
    %4 = vector.load %arg2[%c2, %c0_4, %c0_5] : memref<7x1x128xf32, #tpu.memory_space<vmem>>, vector<1x1x128xf32>
    %5 = vector.shape_cast %4 : vector<1x1x128xf32> to vector<1x128xf32>
    %c3 = arith.constant 3 : index
    %c0_6 = arith.constant 0 : index
    %c0_7 = arith.constant 0 : index
    %6 = vector.load %arg2[%c3, %c0_6, %c0_7] : memref<7x1x128xf32, #tpu.memory_space<vmem>>, vector<1x1x128xf32>
    %7 = vector.shape_cast %6 : vector<1x1x128xf32> to vector<1x128xf32>
    %c4 = arith.constant 4 : index
    %c0_8 = arith.constant 0 : index
    %c0_9 = arith.constant 0 : index
    %8 = vector.load %arg2[%c4, %c0_8, %c0_9] : memref<7x1x128xf32, #tpu.memory_space<vmem>>, vector<1x1x128xf32>
    %9 = vector.shape_cast %8 : vector<1x1x128xf32> to vector<1x128xf32>
    %c5 = arith.constant 5 : index
    %c0_10 = arith.constant 0 : index
    %c0_11 = arith.constant 0 : index
    %10 = vector.load %arg2[%c5, %c0_10, %c0_11] : memref<7x1x128xf32, #tpu.memory_space<vmem>>, vector<1x1x128xf32>
    %11 = vector.shape_cast %10 : vector<1x1x128xf32> to vector<1x128xf32>
    %c6 = arith.constant 6 : index
    %c0_12 = arith.constant 0 : index
    %c0_13 = arith.constant 0 : index
    %12 = vector.load %arg2[%c6, %c0_12, %c0_13] : memref<7x1x128xf32, #tpu.memory_space<vmem>>, vector<1x1x128xf32>
    %13 = vector.shape_cast %12 : vector<1x1x128xf32> to vector<1x128xf32>
    %c0_14 = arith.constant 0 : index
    %14 = memref.load %arg1[%c0_14] : memref<35xf32, #tpu.memory_space<smem>>
    %15 = vector.broadcast %14 : f32 to vector<1x128xf32>
    %16 = arith.mulf %15, %1 : vector<1x128xf32>
    %c3_15 = arith.constant 3 : index
    %17 = memref.load %arg1[%c3_15] : memref<35xf32, #tpu.memory_space<smem>>
    %18 = vector.broadcast %17 : f32 to vector<1x128xf32>
    %19 = arith.mulf %18, %3 : vector<1x128xf32>
    %20 = arith.addf %16, %19 : vector<1x128xf32>
    %c6_16 = arith.constant 6 : index
    %21 = memref.load %arg1[%c6_16] : memref<35xf32, #tpu.memory_space<smem>>
    %22 = vector.broadcast %21 : f32 to vector<1x128xf32>
    %23 = arith.mulf %22, %5 : vector<1x128xf32>
    %24 = arith.addf %20, %23 : vector<1x128xf32>
    %c9 = arith.constant 9 : index
    %25 = memref.load %arg1[%c9] : memref<35xf32, #tpu.memory_space<smem>>
    %26 = vector.broadcast %25 : f32 to vector<1x128xf32>
    %27 = arith.mulf %26, %7 : vector<1x128xf32>
    %28 = arith.addf %24, %27 : vector<1x128xf32>
    %c12 = arith.constant 12 : index
    %29 = memref.load %arg1[%c12] : memref<35xf32, #tpu.memory_space<smem>>
    %30 = vector.broadcast %29 : f32 to vector<1x128xf32>
    %31 = arith.mulf %30, %9 : vector<1x128xf32>
    %32 = arith.addf %28, %31 : vector<1x128xf32>
    %c15 = arith.constant 15 : index
    %33 = memref.load %arg1[%c15] : memref<35xf32, #tpu.memory_space<smem>>
    %34 = vector.broadcast %33 : f32 to vector<1x128xf32>
    %35 = arith.mulf %34, %11 : vector<1x128xf32>
    %36 = arith.addf %32, %35 : vector<1x128xf32>
    %c18 = arith.constant 18 : index
    %37 = memref.load %arg1[%c18] : memref<35xf32, #tpu.memory_space<smem>>
    %38 = vector.broadcast %37 : f32 to vector<1x128xf32>
    %39 = arith.mulf %38, %13 : vector<1x128xf32>
    %40 = arith.addf %36, %39 : vector<1x128xf32>
    %c21 = arith.constant 21 : index
    %41 = memref.load %arg1[%c21] : memref<35xf32, #tpu.memory_space<smem>>
    %42 = vector.broadcast %41 : f32 to vector<1x128xf32>
    %43 = arith.addf %40, %42 : vector<1x128xf32>
    %cst = arith.constant 5.000000e-01 : f32
    %44 = vector.broadcast %cst : f32 to vector<1x128xf32>
    %45 = arith.mulf %44, %43 : vector<1x128xf32>
    %46 = math.tanh %45 : vector<1x128xf32>
    %cst_17 = arith.constant 5.000000e-01 : f32
    %47 = vector.broadcast %cst_17 : f32 to vector<1x128xf32>
    %48 = arith.mulf %47, %46 : vector<1x128xf32>
    %cst_18 = arith.constant 5.000000e-01 : f32
    %49 = vector.broadcast %cst_18 : f32 to vector<1x128xf32>
    %50 = arith.addf %48, %49 : vector<1x128xf32>
    %c1_19 = arith.constant 1 : index
    %51 = memref.load %arg1[%c1_19] : memref<35xf32, #tpu.memory_space<smem>>
    %52 = vector.broadcast %51 : f32 to vector<1x128xf32>
    %53 = arith.mulf %52, %1 : vector<1x128xf32>
    %c4_20 = arith.constant 4 : index
    %54 = memref.load %arg1[%c4_20] : memref<35xf32, #tpu.memory_space<smem>>
    %55 = vector.broadcast %54 : f32 to vector<1x128xf32>
    %56 = arith.mulf %55, %3 : vector<1x128xf32>
    %57 = arith.addf %53, %56 : vector<1x128xf32>
    %c7 = arith.constant 7 : index
    %58 = memref.load %arg1[%c7] : memref<35xf32, #tpu.memory_space<smem>>
    %59 = vector.broadcast %58 : f32 to vector<1x128xf32>
    %60 = arith.mulf %59, %5 : vector<1x128xf32>
    %61 = arith.addf %57, %60 : vector<1x128xf32>
    %c10 = arith.constant 10 : index
    %62 = memref.load %arg1[%c10] : memref<35xf32, #tpu.memory_space<smem>>
    %63 = vector.broadcast %62 : f32 to vector<1x128xf32>
    %64 = arith.mulf %63, %7 : vector<1x128xf32>
    %65 = arith.addf %61, %64 : vector<1x128xf32>
    %c13 = arith.constant 13 : index
    %66 = memref.load %arg1[%c13] : memref<35xf32, #tpu.memory_space<smem>>
    %67 = vector.broadcast %66 : f32 to vector<1x128xf32>
    %68 = arith.mulf %67, %9 : vector<1x128xf32>
    %69 = arith.addf %65, %68 : vector<1x128xf32>
    %c16 = arith.constant 16 : index
    %70 = memref.load %arg1[%c16] : memref<35xf32, #tpu.memory_space<smem>>
    %71 = vector.broadcast %70 : f32 to vector<1x128xf32>
    %72 = arith.mulf %71, %11 : vector<1x128xf32>
    %73 = arith.addf %69, %72 : vector<1x128xf32>
    %c19 = arith.constant 19 : index
    %74 = memref.load %arg1[%c19] : memref<35xf32, #tpu.memory_space<smem>>
    %75 = vector.broadcast %74 : f32 to vector<1x128xf32>
    %76 = arith.mulf %75, %13 : vector<1x128xf32>
    %77 = arith.addf %73, %76 : vector<1x128xf32>
    %c22 = arith.constant 22 : index
    %78 = memref.load %arg1[%c22] : memref<35xf32, #tpu.memory_space<smem>>
    %79 = vector.broadcast %78 : f32 to vector<1x128xf32>
    %80 = arith.addf %77, %79 : vector<1x128xf32>
    %cst_21 = arith.constant 5.000000e-01 : f32
    %81 = vector.broadcast %cst_21 : f32 to vector<1x128xf32>
    %82 = arith.mulf %81, %80 : vector<1x128xf32>
    %83 = math.tanh %82 : vector<1x128xf32>
    %cst_22 = arith.constant 5.000000e-01 : f32
    %84 = vector.broadcast %cst_22 : f32 to vector<1x128xf32>
    %85 = arith.mulf %84, %83 : vector<1x128xf32>
    %cst_23 = arith.constant 5.000000e-01 : f32
    %86 = vector.broadcast %cst_23 : f32 to vector<1x128xf32>
    %87 = arith.addf %85, %86 : vector<1x128xf32>
    %c2_24 = arith.constant 2 : index
    %88 = memref.load %arg1[%c2_24] : memref<35xf32, #tpu.memory_space<smem>>
    %89 = vector.broadcast %88 : f32 to vector<1x128xf32>
    %90 = arith.mulf %89, %1 : vector<1x128xf32>
    %c5_25 = arith.constant 5 : index
    %91 = memref.load %arg1[%c5_25] : memref<35xf32, #tpu.memory_space<smem>>
    %92 = vector.broadcast %91 : f32 to vector<1x128xf32>
    %93 = arith.mulf %92, %3 : vector<1x128xf32>
    %94 = arith.addf %90, %93 : vector<1x128xf32>
    %c8 = arith.constant 8 : index
    %95 = memref.load %arg1[%c8] : memref<35xf32, #tpu.memory_space<smem>>
    %96 = vector.broadcast %95 : f32 to vector<1x128xf32>
    %97 = arith.mulf %96, %5 : vector<1x128xf32>
    %98 = arith.addf %94, %97 : vector<1x128xf32>
    %c11 = arith.constant 11 : index
    %99 = memref.load %arg1[%c11] : memref<35xf32, #tpu.memory_space<smem>>
    %100 = vector.broadcast %99 : f32 to vector<1x128xf32>
    %101 = arith.mulf %100, %7 : vector<1x128xf32>
    %102 = arith.addf %98, %101 : vector<1x128xf32>
    %c14 = arith.constant 14 : index
    %103 = memref.load %arg1[%c14] : memref<35xf32, #tpu.memory_space<smem>>
    %104 = vector.broadcast %103 : f32 to vector<1x128xf32>
    %105 = arith.mulf %104, %9 : vector<1x128xf32>
    %106 = arith.addf %102, %105 : vector<1x128xf32>
    %c17 = arith.constant 17 : index
    %107 = memref.load %arg1[%c17] : memref<35xf32, #tpu.memory_space<smem>>
    %108 = vector.broadcast %107 : f32 to vector<1x128xf32>
    %109 = arith.mulf %108, %11 : vector<1x128xf32>
    %110 = arith.addf %106, %109 : vector<1x128xf32>
    %c20 = arith.constant 20 : index
    %111 = memref.load %arg1[%c20] : memref<35xf32, #tpu.memory_space<smem>>
    %112 = vector.broadcast %111 : f32 to vector<1x128xf32>
    %113 = arith.mulf %112, %13 : vector<1x128xf32>
    %114 = arith.addf %110, %113 : vector<1x128xf32>
    %c23 = arith.constant 23 : index
    %115 = memref.load %arg1[%c23] : memref<35xf32, #tpu.memory_space<smem>>
    %116 = vector.broadcast %115 : f32 to vector<1x128xf32>
    %117 = arith.addf %114, %116 : vector<1x128xf32>
    %cst_26 = arith.constant 5.000000e-01 : f32
    %118 = vector.broadcast %cst_26 : f32 to vector<1x128xf32>
    %119 = arith.mulf %118, %117 : vector<1x128xf32>
    %120 = math.tanh %119 : vector<1x128xf32>
    %cst_27 = arith.constant 5.000000e-01 : f32
    %121 = vector.broadcast %cst_27 : f32 to vector<1x128xf32>
    %122 = arith.mulf %121, %120 : vector<1x128xf32>
    %cst_28 = arith.constant 5.000000e-01 : f32
    %123 = vector.broadcast %cst_28 : f32 to vector<1x128xf32>
    %124 = arith.addf %122, %123 : vector<1x128xf32>
    %c24 = arith.constant 24 : index
    %125 = memref.load %arg1[%c24] : memref<35xf32, #tpu.memory_space<smem>>
    %126 = vector.broadcast %125 : f32 to vector<1x128xf32>
    %127 = arith.mulf %126, %50 : vector<1x128xf32>
    %c26 = arith.constant 26 : index
    %128 = memref.load %arg1[%c26] : memref<35xf32, #tpu.memory_space<smem>>
    %129 = vector.broadcast %128 : f32 to vector<1x128xf32>
    %130 = arith.mulf %129, %87 : vector<1x128xf32>
    %131 = arith.addf %127, %130 : vector<1x128xf32>
    %c28 = arith.constant 28 : index
    %132 = memref.load %arg1[%c28] : memref<35xf32, #tpu.memory_space<smem>>
    %133 = vector.broadcast %132 : f32 to vector<1x128xf32>
    %134 = arith.mulf %133, %124 : vector<1x128xf32>
    %135 = arith.addf %131, %134 : vector<1x128xf32>
    %c30 = arith.constant 30 : index
    %136 = memref.load %arg1[%c30] : memref<35xf32, #tpu.memory_space<smem>>
    %137 = vector.broadcast %136 : f32 to vector<1x128xf32>
    %138 = arith.addf %135, %137 : vector<1x128xf32>
    %cst_29 = arith.constant 5.000000e-01 : f32
    %139 = vector.broadcast %cst_29 : f32 to vector<1x128xf32>
    %140 = arith.mulf %139, %138 : vector<1x128xf32>
    %141 = math.tanh %140 : vector<1x128xf32>
    %cst_30 = arith.constant 5.000000e-01 : f32
    %142 = vector.broadcast %cst_30 : f32 to vector<1x128xf32>
    %143 = arith.mulf %142, %141 : vector<1x128xf32>
    %cst_31 = arith.constant 5.000000e-01 : f32
    %144 = vector.broadcast %cst_31 : f32 to vector<1x128xf32>
    %145 = arith.addf %143, %144 : vector<1x128xf32>
    %c25 = arith.constant 25 : index
    %146 = memref.load %arg1[%c25] : memref<35xf32, #tpu.memory_space<smem>>
    %147 = vector.broadcast %146 : f32 to vector<1x128xf32>
    %148 = arith.mulf %147, %50 : vector<1x128xf32>
    %c27 = arith.constant 27 : index
    %149 = memref.load %arg1[%c27] : memref<35xf32, #tpu.memory_space<smem>>
    %150 = vector.broadcast %149 : f32 to vector<1x128xf32>
    %151 = arith.mulf %150, %87 : vector<1x128xf32>
    %152 = arith.addf %148, %151 : vector<1x128xf32>
    %c29 = arith.constant 29 : index
    %153 = memref.load %arg1[%c29] : memref<35xf32, #tpu.memory_space<smem>>
    %154 = vector.broadcast %153 : f32 to vector<1x128xf32>
    %155 = arith.mulf %154, %124 : vector<1x128xf32>
    %156 = arith.addf %152, %155 : vector<1x128xf32>
    %c31 = arith.constant 31 : index
    %157 = memref.load %arg1[%c31] : memref<35xf32, #tpu.memory_space<smem>>
    %158 = vector.broadcast %157 : f32 to vector<1x128xf32>
    %159 = arith.addf %156, %158 : vector<1x128xf32>
    %cst_32 = arith.constant 5.000000e-01 : f32
    %160 = vector.broadcast %cst_32 : f32 to vector<1x128xf32>
    %161 = arith.mulf %160, %159 : vector<1x128xf32>
    %162 = math.tanh %161 : vector<1x128xf32>
    %cst_33 = arith.constant 5.000000e-01 : f32
    %163 = vector.broadcast %cst_33 : f32 to vector<1x128xf32>
    %164 = arith.mulf %163, %162 : vector<1x128xf32>
    %cst_34 = arith.constant 5.000000e-01 : f32
    %165 = vector.broadcast %cst_34 : f32 to vector<1x128xf32>
    %166 = arith.addf %164, %165 : vector<1x128xf32>
    %c32 = arith.constant 32 : index
    %167 = memref.load %arg1[%c32] : memref<35xf32, #tpu.memory_space<smem>>
    %168 = vector.broadcast %167 : f32 to vector<1x128xf32>
    %169 = arith.mulf %168, %145 : vector<1x128xf32>
    %c33 = arith.constant 33 : index
    %170 = memref.load %arg1[%c33] : memref<35xf32, #tpu.memory_space<smem>>
    %171 = vector.broadcast %170 : f32 to vector<1x128xf32>
    %172 = arith.mulf %171, %166 : vector<1x128xf32>
    %173 = arith.addf %169, %172 : vector<1x128xf32>
    %c34 = arith.constant 34 : index
    %174 = memref.load %arg1[%c34] : memref<35xf32, #tpu.memory_space<smem>>
    %175 = vector.broadcast %174 : f32 to vector<1x128xf32>
    %176 = arith.addf %173, %175 : vector<1x128xf32>
    %cst_35 = arith.constant 5.000000e-01 : f32
    %177 = vector.broadcast %cst_35 : f32 to vector<1x128xf32>
    %178 = arith.mulf %177, %176 : vector<1x128xf32>
    %179 = math.tanh %178 : vector<1x128xf32>
    %cst_36 = arith.constant 5.000000e-01 : f32
    %180 = vector.broadcast %cst_36 : f32 to vector<1x128xf32>
    %181 = arith.mulf %180, %179 : vector<1x128xf32>
    %cst_37 = arith.constant 5.000000e-01 : f32
    %182 = vector.broadcast %cst_37 : f32 to vector<1x128xf32>
    %183 = arith.addf %181, %182 : vector<1x128xf32>
    %c0_38 = arith.constant 0 : index
    %c0_39 = arith.constant 0 : index
    %184 = vector.load %arg3[%c0_38, %c0_39] : memref<1x128xf32, #tpu.memory_space<vmem>>, vector<1x128xf32>
    tpu.vector_store %arg3[%c0_38, %c0_39], %183 {strides = array<i32>} : memref<1x128xf32, #tpu.memory_space<vmem>>, vector<1x128xf32>,
    return
  }
  func.func @transform_0(%arg0: i32, %arg1: memref<35xf32, #tpu.memory_space<smem>>) -> (i32, i32, i32) {
    %c0_i32 = arith.constant 0 : i32
    %c0_i32_0 = arith.constant 0 : i32
    %c0_i32_1 = arith.constant 0 : i32
    return %c0_i32, %arg0, %c0_i32_0 : i32, i32, i32
  }
  func.func @transform_1(%arg0: i32, %arg1: memref<35xf32, #tpu.memory_space<smem>>) -> (i32, i32) {
    %c0_i32 = arith.constant 0 : i32
    %c0_i32_0 = arith.constant 0 : i32
    return %arg0, %c0_i32 : i32, i32
  }
}

</mosaic_0001>

<llo_original>
// kernel: ecoli_forward.1
$region0: #{ecoli_forward.1}
  #allocation0 [shape = 'u32[]', space=smem, size = 0x4, offset = 0x4, fixed_abs, tag = 'smem constant byte address 0x4 - core index']
  #allocation1 [shape = 'u32[144,128]{1,0:T(1,128)}', space=vmem, size = 0x12000, scoped, tag = 'internal scratch']
  #allocation2 [shape = 's32[1]{0}', space=sflag, size = 0x4, scoped, tag = 'scoped memory for ecoli_forward.1']
  #allocation3 [shape = 'u8[512]{0}', space=smem, size = 0x200, scoped, tag = 'prefetched SMEM operand 0']
  %s0 = inlined_call_operand.vmem [shape: f32[35], index: 0, kind: input, shape index: {}]
  %s1 = inlined_call_operand.vmem [shape: f32[7,1,128], index: 1, kind: input, shape index: {}]
  %s2 = inlined_call_operand.vmem [shape: f32[1,128], index: 2, kind: output, shape index: {}]
  %s3 = sld [smem:[#allocation0]]
  $region14: #{ecoli_forward.1} parent=0
    _
  %s5 = ssub.s32 1, %s3
  %s6 = scalar_select 0, %s5, %s3
  %s7 = sshll.u32 %s0, 4
  %s8 = int_to_ptr.vmem [resolvable:$true] %s7
  %10 = dma.vmem_to_smem %s8, 16, [#allocation3], [#allocation2]
  %11 = dma.done [#allocation2], 16
  %12 = sfence
  // Predicated region
  $region2: #{ecoli_forward.1} parent=0 // pred_check
    _
  $region3: #{ecoli_forward.1} parent=0 // pred_check_branch
    %14 = sbr.rel (0) target = $region5
  $region4: #{ecoli_forward.1} parent=0 // pred_region
    _
  $region5: #{ecoli_forward.1} parent=0 // pred_fallthru
    _
  %v15 = vld [vmem:[%s1] sm:$0x1]
  %s16 = scalar_lea.vmem %s1, 1
  %v17 = vld [vmem:[%s16] sm:$0x1]
  %s18 = scalar_lea.vmem %s1, 2
  %v19 = vld [vmem:[%s18] sm:$0x1]
  %s20 = scalar_lea.vmem %s1, 3
  %v21 = vld [vmem:[%s20] sm:$0x1]
  %s22 = scalar_lea.vmem %s1, 4
  %v23 = vld [vmem:[%s22] sm:$0x1]
  %s24 = scalar_lea.vmem %s1, 5
  %v25 = vld [vmem:[%s24] sm:$0x1]
  %s26 = scalar_lea.vmem %s1, 6
  %v27 = vld [vmem:[%s26] sm:$0x1]
  %s28 = sld [smem:[#allocation3]]
  %v29 = vstv %s28
  %v30 = vmul.f32 %v29, %v15
  %s31 = sld [smem:[#allocation3 + $0x3]]
  %v32 = vstv %s31
  %v33 = vmul.f32 %v32, %v17
  %v34 = vadd.f32 %v30, %v33
  %s35 = sld [smem:[#allocation3 + $0x6]]
  %v36 = vstv %s35
  %v37 = vmul.f32 %v36, %v19
  %v38 = vadd.f32 %v34, %v37
  %s39 = sld [smem:[#allocation3 + $0x9]]
  %v40 = vstv %s39
  %v41 = vmul.f32 %v40, %v21
  %v42 = vadd.f32 %v38, %v41
  %s43 = sld [smem:[#allocation3 + $0xc]]
  %v44 = vstv %s43
  %v45 = vmul.f32 %v44, %v23
  %v46 = vadd.f32 %v42, %v45
  %s47 = sld [smem:[#allocation3 + $0xf]]
  %v48 = vstv %s47
  %v49 = vmul.f32 %v48, %v25
  %v50 = vadd.f32 %v46, %v49
  %s51 = sld [smem:[#allocation3 + $0x12]]
  %v52 = vstv %s51
  %v53 = vmul.f32 %v52, %v27
  %v54 = vadd.f32 %v50, %v53
  %s55 = sld [smem:[#allocation3 + $0x15]]
  %v56 = vstv %s55
  %v57 = vadd.f32 %v54, %v56
  %v58 = vmul.f32 %v57, 0.5
  %v59 = vtanh.pop %v58
  %v60 = vmul.f32 %v59, 0.5
  %v61 = vadd.f32 %v60, 0.5
  %s62 = sld [smem:[#allocation3 + $0x1]]
  %v63 = vstv %s62
  %v64 = vmul.f32 %v63, %v15
  %s65 = sld [smem:[#allocation3 + $0x4]]
  %v66 = vstv %s65
  %v67 = vmul.f32 %v66, %v17
  %v68 = vadd.f32 %v64, %v67
  %s69 = sld [smem:[#allocation3 + $0x7]]
  %v70 = vstv %s69
  %v71 = vmul.f32 %v70, %v19
  %v72 = vadd.f32 %v68, %v71
  %s73 = sld [smem:[#allocation3 + $0xa]]
  %v74 = vstv %s73
  %v75 = vmul.f32 %v74, %v21
  %v76 = vadd.f32 %v72, %v75
  %s77 = sld [smem:[#allocation3 + $0xd]]
  %v78 = vstv %s77
  %v79 = vmul.f32 %v78, %v23
  %v80 = vadd.f32 %v76, %v79
  %s81 = sld [smem:[#allocation3 + $0x10]]
  %v82 = vstv %s81
  %v83 = vmul.f32 %v82, %v25
  %v84 = vadd.f32 %v80, %v83
  %s85 = sld [smem:[#allocation3 + $0x13]]
  %v86 = vstv %s85
  %v87 = vmul.f32 %v86, %v27
  %v88 = vadd.f32 %v84, %v87
  %s89 = sld [smem:[#allocation3 + $0x16]]
  %v90 = vstv %s89
  %v91 = vadd.f32 %v88, %v90
  %v92 = vmul.f32 %v91, 0.5
  %v93 = vtanh.pop %v92
  %v94 = vmul.f32 %v93, 0.5
  %v95 = vadd.f32 %v94, 0.5
  %s96 = sld [smem:[#allocation3 + $0x2]]
  %v97 = vstv %s96
  %v98 = vmul.f32 %v97, %v15
  %s99 = sld [smem:[#allocation3 + $0x5]]
  %v100 = vstv %s99
  %v101 = vmul.f32 %v100, %v17
  %v102 = vadd.f32 %v98, %v101
  %s103 = sld [smem:[#allocation3 + $0x8]]
  %v104 = vstv %s103
  %v105 = vmul.f32 %v104, %v19
  %v106 = vadd.f32 %v102, %v105
  %s107 = sld [smem:[#allocation3 + $0xb]]
  %v108 = vstv %s107
  %v109 = vmul.f32 %v108, %v21
  %v110 = vadd.f32 %v106, %v109
  %s111 = sld [smem:[#allocation3 + $0xe]]
  %v112 = vstv %s111
  %v113 = vmul.f32 %v112, %v23
  %v114 = vadd.f32 %v110, %v113
  %s115 = sld [smem:[#allocation3 + $0x11]]
  %v116 = vstv %s115
  %v117 = vmul.f32 %v116, %v25
  %v118 = vadd.f32 %v114, %v117
  %s119 = sld [smem:[#allocation3 + $0x14]]
  %v120 = vstv %s119
  %v121 = vmul.f32 %v120, %v27
  %v122 = vadd.f32 %v118, %v121
  %s123 = sld [smem:[#allocation3 + $0x17]]
  %v124 = vstv %s123
  %v125 = vadd.f32 %v122, %v124
  %v126 = vmul.f32 %v125, 0.5
  %v127 = vtanh.pop %v126
  %v128 = vmul.f32 %v127, 0.5
  %v129 = vadd.f32 %v128, 0.5
  %s130 = sld [smem:[#allocation3 + $0x18]]
  %v131 = vstv %s130
  %v132 = vmul.f32 %v131, %v61
  %s133 = sld [smem:[#allocation3 + $0x1a]]
  %v134 = vstv %s133
  %v135 = vmul.f32 %v134, %v95
  %v136 = vadd.f32 %v132, %v135
  %s137 = sld [smem:[#allocation3 + $0x1c]]
  %v138 = vstv %s137
  %v139 = vmul.f32 %v138, %v129
  %v140 = vadd.f32 %v136, %v139
  %s141 = sld [smem:[#allocation3 + $0x1e]]
  %v142 = vstv %s141
  %v143 = vadd.f32 %v140, %v142
  %v144 = vmul.f32 %v143, 0.5
  %v145 = vtanh.pop %v144
  %v146 = vmul.f32 %v145, 0.5
  %v147 = vadd.f32 %v146, 0.5
  %s148 = sld [smem:[#allocation3 + $0x19]]
  %v149 = vstv %s148
  %v150 = vmul.f32 %v149, %v61
  %s151 = sld [smem:[#allocation3 + $0x1b]]
  %v152 = vstv %s151
  %v153 = vmul.f32 %v152, %v95
  %v154 = vadd.f32 %v150, %v153
  %s155 = sld [smem:[#allocation3 + $0x1d]]
  %v156 = vstv %s155
  %v157 = vmul.f32 %v156, %v129
  %v158 = vadd.f32 %v154, %v157
  %s159 = sld [smem:[#allocation3 + $0x1f]]
  %v160 = vstv %s159
  %v161 = vadd.f32 %v158, %v160
  %v162 = vmul.f32 %v161, 0.5
  %v163 = vtanh.pop %v162
  %v164 = vmul.f32 %v163, 0.5
  %v165 = vadd.f32 %v164, 0.5
  %s166 = sld [smem:[#allocation3 + $0x20]]
  %v167 = vstv %s166
  %v168 = vmul.f32 %v167, %v147
  %s169 = sld [smem:[#allocation3 + $0x21]]
  %v170 = vstv %s169
  %v171 = vmul.f32 %v170, %v165
  %v172 = vadd.f32 %v168, %v171
  %s173 = sld [smem:[#allocation3 + $0x22]]
  %v174 = vstv %s173
  %v175 = vadd.f32 %v172, %v174
  %v176 = vmul.f32 %v175, 0.5
  %v177 = vtanh.pop %v176
  %v178 = vmul.f32 %v177, 0.5
  %v179 = vadd.f32 %v178, 0.5
  %180 = vst [vmem:[%s2] sm:$0x1] %v179
  // Predicated region
  $region6: #{ecoli_forward.1} parent=0 // pred_check
    _
  $region7: #{ecoli_forward.1} parent=0 // pred_check_branch
    %182 = sbr.rel (0) target = $region9
  $region8: #{ecoli_forward.1} parent=0 // pred_region
    _
  $region9: #{ecoli_forward.1} parent=0 // pred_fallthru
    _
  // Predicated region
  $region10: #{ecoli_forward.1} parent=0 // pred_check
    _
  $region11: #{ecoli_forward.1} parent=0 // pred_check_branch
    %184 = sbr.rel (0) target = $region13
  $region12: #{ecoli_forward.1} parent=0 // pred_region
    _
  $region13: #{ecoli_forward.1} parent=0 // pred_fallthru
    _

</llo_original>
